<compile_context>
chip_gen: v7x
topology: tpu7x:2x2x1
jax: 0.10.0
libtpu: 0.0.40
codegen_flags: <defaults>
</compile_context>

<pallas_src>
import math

import jax
import jax.numpy as jnp
from jax.experimental import pallas as pl
from jax.experimental.pallas import tpu as pltpu

NUM_HID = 32      # num_hid of PolarNet
BATCH = 1024      # number of 2-D points in the demo (spiral dataset scale)
CHUNK = 512       # inner lane-chunk: (NUM_HID, CHUNK) f32 = 16 vregs live
MAX_TILE = 4096   # cap on the per-grid-step DMA tile along the batch axis


def polarnet_kernel(x_ref, p_ref, out_ref):
    # x_ref:  (2, tile_n)        cartesian points, batch on lanes
    # p_ref:  (NUM_HID, 5)       packed params: [w1_r | w1_a | b1 | w2 | b2]
    # out_ref:(1, tile_n)        sigmoid output, batch on lanes

    # Hoisted once per grid step (outside the chunk loop): param column slices
    # and their implied broadcasts.
    p = p_ref[...]                                  # (NUM_HID, 5)
    w1_r = p[:, 0:1]                                # (NUM_HID, 1)
    w1_a = p[:, 1:2]                                # (NUM_HID, 1)
    b1 = p[:, 2:3]                                  # (NUM_HID, 1)
    w2 = p[:, 3:4]                                  # (NUM_HID, 1)
    b2 = p[0:1, 4:5]                                # (1, 1)

    tile_n = out_ref.shape[1]
    chunk = min(CHUNK, tile_n)
    n_chunks = tile_n // chunk                      # exact by construction

    # Static-trip-count chunk loop with static slices (zero-cost ref views);
    # keeps the live (NUM_HID, chunk) slab small even for big DMA tiles.
    for c in range(n_chunks):
        lo, hi = c * chunk, (c + 1) * chunk
        x = x_ref[:, lo:hi]                         # (2, chunk)
        px = x[0:1, :]                              # (1, chunk)
        py = x[1:2, :]                              # (1, chunk)

        # cartesian -> polar (r, theta); same semantics as torch.sqrt / atan2.
        r = jnp.sqrt(px * px + py * py)             # (1, chunk)
        a = jnp.arctan2(py, px)                     # (1, chunk)

        # lin1 + tanh: K=2 contraction expanded as two FMAs (VPU broadcasts).
        hid = jnp.tanh(w1_r * r + w1_a * a + b1)    # (NUM_HID, chunk)

        # lin2: 32-deep sublane reduce instead of a degenerate (x32 -> 1) MXU dot.
        lin2 = jnp.sum(hid * w2, axis=0, keepdims=True) + b2   # (1, chunk)

        # Exact sigmoid (no approximate reciprocal).
        sig = 1.0 / (1.0 + jnp.exp(-lin2))
        out_ref[:, lo:hi] = sig.astype(out_ref.dtype)


def polarnet_forward(x, w1, b1, w2, b2):
    """x: (N, 2); w1: (H, 2); b1: (H,); w2: (1, H); b2: (1,) — torch layouts.

    Returns (N, 1) sigmoid output, matching PolarNet.forward.
    """
    n = x.shape[0]
    h = w1.shape[0]

    # Pad the batch to a multiple of the inner chunk (lane-dense), then pick
    # the largest DMA tile <= MAX_TILE that evenly divides the padded batch.
    n_pad = ((n + CHUNK - 1) // CHUNK) * CHUNK
    if n_pad > MAX_TILE:
        n_pad = ((n_pad + MAX_TILE - 1) // MAX_TILE) * MAX_TILE
        tile_n = MAX_TILE
    else:
        tile_n = n_pad                              # single grid step for small N

    x_t = jnp.transpose(x).astype(jnp.float32)      # (2, N), batch on lanes
    if n_pad != n:
        x_t = jnp.pad(x_t, ((0, 0), (0, n_pad - n)))  # zeros: atan2(0,0)=0, no NaN

    # Pack all parameters into one replicated VMEM tile: [w1_r|w1_a|b1|w2|b2].
    params = jnp.concatenate(
        [w1,
         b1.reshape(h, 1),
         jnp.transpose(w2),
         jnp.broadcast_to(b2.reshape(1, 1), (h, 1))],
        axis=1).astype(jnp.float32)                 # (H, 5)

    out = pl.pallas_call(
        polarnet_kernel,
        out_shape=jax.ShapeDtypeStruct((1, n_pad), jnp.float32),
        grid=(n_pad // tile_n,),
        in_specs=[
            pl.BlockSpec((2, tile_n), lambda i: (0, i)),   # x: tiled over batch lanes
            pl.BlockSpec((h, 5), lambda i: (0, 0)),        # packed params: replicated
        ],
        out_specs=pl.BlockSpec((1, tile_n), lambda i: (0, i)),
        compiler_params=pltpu.CompilerParams(
            dimension_semantics=("parallel",)),
    )(x_t, params)

    return jnp.transpose(out[:, :n])                # (N, 1), torch output shape


def polarnet_ref(x, w1, b1, w2, b2):
    """Plain-JAX reference mirroring the PyTorch forward exactly."""
    r = jnp.sqrt(x[:, 0] * x[:, 0] + x[:, 1] * x[:, 1]).reshape(-1, 1)
    a = jnp.arctan2(x[:, 1], x[:, 0]).reshape(-1, 1)
    concat = jnp.concatenate((r, a), axis=1)
    hid1 = jnp.tanh(concat @ w1.T + b1)
    return jax.nn.sigmoid(hid1 @ w2.T + b2)


if __name__ == "__main__":
    key = jax.random.PRNGKey(0)
    kx, k1, k2, k3, k4 = jax.random.split(key, 5)

    # Parameter init matching torch.nn.Linear defaults:
    # uniform(-1/sqrt(fan_in), 1/sqrt(fan_in)) for both weight and bias.
    bound1 = 1.0 / math.sqrt(2.0)
    bound2 = 1.0 / math.sqrt(NUM_HID)
    w1 = jax.random.uniform(k1, (NUM_HID, 2), jnp.float32, -bound1, bound1)
    b1 = jax.random.uniform(k2, (NUM_HID,), jnp.float32, -bound1, bound1)
    w2 = jax.random.uniform(k3, (1, NUM_HID), jnp.float32, -bound2, bound2)
    b2 = jax.random.uniform(k4, (1,), jnp.float32, -bound2, bound2)

    # Example input: 1024 points in the plane (like spiral dataset points).
    x = 2.0 * jax.random.normal(kx, (BATCH, 2), jnp.float32)

    # jit so the wrapper transposes fuse with surrounding XLA work.
    fwd = jax.jit(polarnet_forward)
    out = jax.block_until_ready(fwd(x, w1, b1, w2, b2))

    ref = polarnet_ref(x, w1, b1, w2, b2)
    assert out.shape == (BATCH, 1)
    err = float(jnp.max(jnp.abs(out - ref)))
    # Exact sigmoid now; 2e-3 leaves ample headroom for any tanh/atan2
    # transcendental-approximation differences between Mosaic and XLA.
    assert err < 2e-3, f"max abs err {err}"

    print("KERNEL_OK")
</pallas_src>

<mosaic_0001>
module attributes {stable_mosaic.version = 11 : i64} {
  func.func @polarnet_kernel(%arg0: i32, %arg1: memref<2x1024xf32, #tpu.memory_space<vmem>>, %arg2: memref<32x5xf32, #tpu.memory_space<vmem>>, %arg3: memref<1x1024xf32, #tpu.memory_space<vmem>>) attributes {dimension_semantics = [#tpu.dimension_semantics<parallel>], iteration_bounds = array<i64: 1>, scalar_prefetch = 0 : i64, scratch_operands = 0 : i64, tpu.core_type = #tpu.core_type<tc>, window_params = [{transform_indices = @transform_0, window_bounds = array<i64: 2, 1024>}, {pipeline_mode = #tpu.pipeline_mode<synchronous>, transform_indices = @transform_1, window_bounds = array<i64: 32, 5>}, {transform_indices = @transform_2, window_bounds = array<i64: 1, 1024>}]} {
    %c0 = arith.constant 0 : index
    %c0_0 = arith.constant 0 : index
    %0 = vector.load %arg2[%c0, %c0_0] : memref<32x5xf32, #tpu.memory_space<vmem>>, vector<32x5xf32>
    %1 = vector.extract_strided_slice %0 {offsets = [0, 0], sizes = [32, 1], strides = [1, 1]} : vector<32x5xf32> to vector<32x1xf32>
    %2 = vector.extract_strided_slice %0 {offsets = [0, 1], sizes = [32, 1], strides = [1, 1]} : vector<32x5xf32> to vector<32x1xf32>
    %3 = vector.extract_strided_slice %0 {offsets = [0, 2], sizes = [32, 1], strides = [1, 1]} : vector<32x5xf32> to vector<32x1xf32>
    %4 = vector.extract_strided_slice %0 {offsets = [0, 3], sizes = [32, 1], strides = [1, 1]} : vector<32x5xf32> to vector<32x1xf32>
    %5 = vector.extract_strided_slice %0 {offsets = [0, 4], sizes = [1, 1], strides = [1, 1]} : vector<32x5xf32> to vector<1x1xf32>
    %c0_1 = arith.constant 0 : index
    %c0_2 = arith.constant 0 : index
    %6 = vector.load %arg1[%c0_1, %c0_2] : memref<2x1024xf32, #tpu.memory_space<vmem>>, vector<2x512xf32>
    %7 = vector.extract_strided_slice %6 {offsets = [0, 0], sizes = [1, 512], strides = [1, 1]} : vector<2x512xf32> to vector<1x512xf32>
    %8 = vector.extract_strided_slice %6 {offsets = [1, 0], sizes = [1, 512], strides = [1, 1]} : vector<2x512xf32> to vector<1x512xf32>
    %9 = arith.mulf %7, %7 : vector<1x512xf32>
    %10 = arith.mulf %8, %8 : vector<1x512xf32>
    %11 = arith.addf %9, %10 : vector<1x512xf32>
    %12 = math.sqrt %11 : vector<1x512xf32>
    %13 = math.atan2 %8, %7 : vector<1x512xf32>
    %14 = vector.broadcast %1 : vector<32x1xf32> to vector<32x512xf32>
    %15 = vector.broadcast %12 : vector<1x512xf32> to vector<32x512xf32>
    %16 = arith.mulf %14, %15 : vector<32x512xf32>
    %17 = vector.broadcast %2 : vector<32x1xf32> to vector<32x512xf32>
    %18 = vector.broadcast %13 : vector<1x512xf32> to vector<32x512xf32>
    %19 = arith.mulf %17, %18 : vector<32x512xf32>
    %20 = arith.addf %16, %19 : vector<32x512xf32>
    %21 = vector.broadcast %3 : vector<32x1xf32> to vector<32x512xf32>
    %22 = arith.addf %20, %21 : vector<32x512xf32>
    %23 = math.tanh %22 : vector<32x512xf32>
    %24 = vector.broadcast %4 : vector<32x1xf32> to vector<32x512xf32>
    %25 = arith.mulf %23, %24 : vector<32x512xf32>
    %cst = arith.constant dense<0.000000e+00> : vector<512xf32>
    %26 = vector.multi_reduction <add>, %25, %cst [0] : vector<32x512xf32> to vector<512xf32>
    %27 = vector.shape_cast %26 : vector<512xf32> to vector<1x512xf32>
    %28 = vector.broadcast %5 : vector<1x1xf32> to vector<1x512xf32>
    %29 = arith.addf %27, %28 : vector<1x512xf32>
    %cst_3 = arith.constant 0.000000e+00 : f32
    %30 = vector.broadcast %cst_3 : f32 to vector<1x512xf32>
    %31 = arith.subf %30, %29 : vector<1x512xf32>
    %32 = math.exp %31 : vector<1x512xf32>
    %cst_4 = arith.constant 1.000000e+00 : f32
    %33 = vector.broadcast %cst_4 : f32 to vector<1x512xf32>
    %34 = arith.addf %33, %32 : vector<1x512xf32>
    %cst_5 = arith.constant 1.000000e+00 : f32
    %35 = vector.broadcast %cst_5 : f32 to vector<1x512xf32>
    %36 = arith.divf %35, %34 : vector<1x512xf32>
    %c0_6 = arith.constant 0 : index
    %c0_7 = arith.constant 0 : index
    %37 = vector.load %arg3[%c0_6, %c0_7] : memref<1x1024xf32, #tpu.memory_space<vmem>>, vector<1x512xf32>
    tpu.vector_store %arg3[%c0_6, %c0_7], %36 {strides = array<i32>} : memref<1x1024xf32, #tpu.memory_space<vmem>>, vector<1x512xf32>,
    %c0_8 = arith.constant 0 : index
    %c512 = arith.constant 512 : index
    %38 = vector.load %arg1[%c0_8, %c512] : memref<2x1024xf32, #tpu.memory_space<vmem>>, vector<2x512xf32>
    %39 = vector.extract_strided_slice %38 {offsets = [0, 0], sizes = [1, 512], strides = [1, 1]} : vector<2x512xf32> to vector<1x512xf32>
    %40 = vector.extract_strided_slice %38 {offsets = [1, 0], sizes = [1, 512], strides = [1, 1]} : vector<2x512xf32> to vector<1x512xf32>
    %41 = arith.mulf %39, %39 : vector<1x512xf32>
    %42 = arith.mulf %40, %40 : vector<1x512xf32>
    %43 = arith.addf %41, %42 : vector<1x512xf32>
    %44 = math.sqrt %43 : vector<1x512xf32>
    %45 = math.atan2 %40, %39 : vector<1x512xf32>
    %46 = vector.broadcast %1 : vector<32x1xf32> to vector<32x512xf32>
    %47 = vector.broadcast %44 : vector<1x512xf32> to vector<32x512xf32>
    %48 = arith.mulf %46, %47 : vector<32x512xf32>
    %49 = vector.broadcast %2 : vector<32x1xf32> to vector<32x512xf32>
    %50 = vector.broadcast %45 : vector<1x512xf32> to vector<32x512xf32>
    %51 = arith.mulf %49, %50 : vector<32x512xf32>
    %52 = arith.addf %48, %51 : vector<32x512xf32>
    %53 = vector.broadcast %3 : vector<32x1xf32> to vector<32x512xf32>
    %54 = arith.addf %52, %53 : vector<32x512xf32>
    %55 = math.tanh %54 : vector<32x512xf32>
    %56 = vector.broadcast %4 : vector<32x1xf32> to vector<32x512xf32>
    %57 = arith.mulf %55, %56 : vector<32x512xf32>
    %cst_9 = arith.constant dense<0.000000e+00> : vector<512xf32>
    %58 = vector.multi_reduction <add>, %57, %cst_9 [0] : vector<32x512xf32> to vector<512xf32>
    %59 = vector.shape_cast %58 : vector<512xf32> to vector<1x512xf32>
    %60 = vector.broadcast %5 : vector<1x1xf32> to vector<1x512xf32>
    %61 = arith.addf %59, %60 : vector<1x512xf32>
    %cst_10 = arith.constant 0.000000e+00 : f32
    %62 = vector.broadcast %cst_10 : f32 to vector<1x512xf32>
    %63 = arith.subf %62, %61 : vector<1x512xf32>
    %64 = math.exp %63 : vector<1x512xf32>
    %cst_11 = arith.constant 1.000000e+00 : f32
    %65 = vector.broadcast %cst_11 : f32 to vector<1x512xf32>
    %66 = arith.addf %65, %64 : vector<1x512xf32>
    %cst_12 = arith.constant 1.000000e+00 : f32
    %67 = vector.broadcast %cst_12 : f32 to vector<1x512xf32>
    %68 = arith.divf %67, %66 : vector<1x512xf32>
    %c0_13 = arith.constant 0 : index
    %c512_14 = arith.constant 512 : index
    %69 = vector.load %arg3[%c0_13, %c512_14] : memref<1x1024xf32, #tpu.memory_space<vmem>>, vector<1x512xf32>
    tpu.vector_store %arg3[%c0_13, %c512_14], %68 {strides = array<i32>} : memref<1x1024xf32, #tpu.memory_space<vmem>>, vector<1x512xf32>,
    return
  }
  func.func @transform_0(%arg0: i32) -> (i32, i32) {
    %c0_i32 = arith.constant 0 : i32
    %c0_i32_0 = arith.constant 0 : i32
    return %c0_i32, %arg0 : i32, i32
  }
  func.func @transform_1(%arg0: i32) -> (i32, i32) {
    %c0_i32 = arith.constant 0 : i32
    %c0_i32_0 = arith.constant 0 : i32
    %c0_i32_1 = arith.constant 0 : i32
    return %c0_i32, %c0_i32_0 : i32, i32
  }
  func.func @transform_2(%arg0: i32) -> (i32, i32) {
    %c0_i32 = arith.constant 0 : i32
    %c0_i32_0 = arith.constant 0 : i32
    return %c0_i32, %arg0 : i32, i32
  }
}

</mosaic_0001>

<llo_original>
// kernel: polarnet_forward.1
$region0: #{polarnet_forward.1}
  #allocation0 [shape = 'u32[]', space=smem, size = 0x4, offset = 0x4, fixed_abs, tag = 'smem constant byte address 0x4 - core index']
  #allocation1 [shape = 'u32[144,128]{1,0:T(1,128)}', space=vmem, size = 0x12000, scoped, tag = 'internal scratch']
  %s0 = inlined_call_operand.vmem [shape: f32[2,1024], index: 0, kind: input, shape index: {}]
  %s1 = inlined_call_operand.vmem [shape: f32[32,5], index: 1, kind: input, shape index: {}]
  %s2 = inlined_call_operand.hbm [shape: f32[1,1024], index: 2, kind: output, shape index: {}]
  %s3 = sld [smem:[#allocation0]]
  $region18: #{polarnet_forward.1} parent=0
    _
  %s5 = ssub.s32 1, %s3
  %s6 = scalar_select 0, %s5, %s3
  $region1: #{polarnet_forward.1} parent=0
    #allocation2 [shape = 'u8[4096]{0}', space=vmem, size = 0x1000, scoped, tag = 'output window, operand 0, single buffered']
    #allocation3 [shape = 's32[1]{0}', space=sflag, size = 0x4, scoped, tag = 'scoped memory for polarnet_forward.1']
    %7 = vsyncpa [#allocation3], 0
    // Predicated region
    $region2: #{polarnet_forward.1} parent=1 // pred_check
      _
    $region3: #{polarnet_forward.1} parent=1 // pred_check_branch
      %9 = sbr.rel (0) target = $region5
    $region4: #{polarnet_forward.1} parent=1 // pred_region
      _
    $region5: #{polarnet_forward.1} parent=1 // pred_fallthru
      _
    // Predicated region
    $region6: #{polarnet_forward.1} parent=1 // pred_check
      _
    $region7: #{polarnet_forward.1} parent=1 // pred_check_branch
      %11 = sbr.rel (0) target = $region9
    $region8: #{polarnet_forward.1} parent=1 // pred_region
      _
    $region9: #{polarnet_forward.1} parent=1 // pred_fallthru
      _
    %v12 = vld [vmem:[%s1] sm:$0xff]
    %v13 = vld [vmem:[%s1 + $0x8] sm:$0xff]
    %v14 = vld [vmem:[%s1 + $0x10] sm:$0xff]
    %v15 = vld [vmem:[%s1 + $0x18] sm:$0xff]
    %v16 = vld [vmem:[%s0] sm:$0xff]
    %v17 = vmul.f32 %v16, %v16
    %v19 = vrot.slane %v17, 7
    %v20 = vrot.slane %v19, 2
    %v22 = vadd.f32 %v17, %v20
    %v23 = vrsqrt.pop %v22
    %v24 = vmul.f32 %v22, %v23
    %vm25 = vcmp.eq.f32.partialorder %v22, inf
    %v26 = vsel %vm25, %v22, %v24
    %vm27 = vcmp.eq.f32.partialorder %v22, 0.0
    %v28 = vand.u32 %v22, 2147483648
    %v29 = vsel %vm27, %v28, %v26
    %v31 = vrot.slane %v16, 7
    %v33 = vand.u32 2147483647, %v31
    %v34 = vand.u32 2147483647, %v16
    %v35 = vmin.f32 %v33, %v34
    %v36 = vmax.f32 %v33, %v34
    %v37 = vrcp.pop %v36
    %v38 = vmul.f32 %v35, %v37
    %v39 = vmul.f32 %v38, %v38
    %v40 = vmul.f32 0.002785687, %v39
    %v41 = vadd.f32 %v40, -0.015866
    %v42 = vmul.f32 %v41, %v39
    %v43 = vadd.f32 %v42, 0.04247222
    %v44 = vmul.f32 %v43, %v39
    %v45 = vadd.f32 %v44, -0.074975304
    %v46 = vmul.f32 %v45, %v39
    %v47 = vadd.f32 %v46, 0.1064488
    %v48 = vmul.f32 %v47, %v39
    %v49 = vadd.f32 %v48, -0.14207031
    %v50 = vmul.f32 %v49, %v39
    %v51 = vadd.f32 %v50, 0.19993454
    %v52 = vmul.f32 %v51, %v39
    %v53 = vadd.f32 %v52, -0.33333147
    %v54 = vmul.f32 %v53, %v39
    %v55 = vmul.f32 %v54, %v38
    %v56 = vadd.f32 %v55, %v38
    %vm57 = vcmp.gt.f32.partialorder %v34, %v33
    %v58 = vsub.f32 1.5707964, %v56
    %v59 = vsel %vm57, %v58, %v56
    %vm60 = vcmp.lt.f32.partialorder %v31, 0.0
    %v61 = vsub.f32 3.1415927, %v59
    %v62 = vsel %vm60, %v61, %v59
    %vm63 = vcmp.lt.s32.totalorder %v31, 0
    %v64 = vsel %vm63, 3.1415927, 0.0
    %vm65 = vcmp.eq.f32.partialorder %v16, 0.0
    %v66 = vsel %vm65, %v64, %v62
    %vm67 = vcmp.ne.f32.partialorder %v31, %v31
    %vm68 = vcmp.ne.f32.partialorder %v16, %v16
    %vm69 = vmor %vm67, %vm68
    %v70 = vsel %vm69, nan, %v66
    %vm71 = vcmp.lt.f32.partialorder %v31, 0.0
    %v72 = vsel %vm71, 2.3561945, 0.7853982
    %vm73 = vcmp.eq.s32.totalorder %v33, inf
    %vm74 = vcmp.eq.s32.totalorder %v34, inf
    %vm75 = vmand %vm73, %vm74
    %v76 = vsel %vm75, %v72, %v70
    %v77 = vand.u32 2147483647, %v76
    %v78 = vand.u32 %v16, 2147483648
    %v79 = vor.u32 %v77, %v78
    %81 = vset.pattern.permute.xlu0 0
    %82 = vperm.xlu0 %81, %v12
    %v83 = vpop.permute.xlu0 %82
    %86 = vset.pattern.permute.xlu0 0
    %87 = vperm.xlu0 %86, %v13
    %v88 = vpop.permute.xlu0 %87
    %91 = vset.pattern.permute.xlu0 0
    %92 = vperm.xlu0 %91, %v14
    %v93 = vpop.permute.xlu0 %92
    %96 = vset.pattern.permute.xlu0 0
    %97 = vperm.xlu0 %96, %v15
    %v98 = vpop.permute.xlu0 %97
    %v101 = vlaneseq
    %v102 = vshrl.u32 %v101, 7
    %v103 = vsub.s32 0, %v102
    %v104 = vrot.slane %v29, %v103
    %v105 = vlaneseq
    %v106 = vshrl.u32 %v105, 7
    %v107 = vsub.s32 2, %v106
    %v108 = vrot.slane %v29, %v107
    %v109 = vlaneseq
    %v110 = vshrl.u32 %v109, 7
    %v111 = vsub.s32 4, %v110
    %v112 = vrot.slane %v29, %v111
    %v113 = vlaneseq
    %v114 = vshrl.u32 %v113, 7
    %v115 = vsub.s32 6, %v114
    %v116 = vrot.slane %v29, %v115
    %v121 = vlaneseq
    %v122 = vshrl.u32 %v121, 7
    %v123 = vsub.s32 0, %v122
    %v124 = vrot.slane %v104, %v123
    %v125 = vlaneseq
    %v126 = vshrl.u32 %v125, 7
    %v127 = vsub.s32 0, %v126
    %v128 = vrot.slane %v108, %v127
    %v129 = vlaneseq
    %v130 = vshrl.u32 %v129, 7
    %v131 = vsub.s32 0, %v130
    %v132 = vrot.slane %v112, %v131
    %v133 = vlaneseq
    %v134 = vshrl.u32 %v133, 7
    %v135 = vsub.s32 0, %v134
    %v136 = vrot.slane %v116, %v135
    %v137 = vmul.f32 %v83, %v124
    %v138 = vmul.f32 %v83, %v128
    %v139 = vmul.f32 %v83, %v132
    %v140 = vmul.f32 %v83, %v136
    %v141 = vmul.f32 %v88, %v124
    %v142 = vmul.f32 %v88, %v128
    %v143 = vmul.f32 %v88, %v132
    %v144 = vmul.f32 %v88, %v136
    %v145 = vmul.f32 %v93, %v124
    %v146 = vmul.f32 %v93, %v128
    %v147 = vmul.f32 %v93, %v132
    %v148 = vmul.f32 %v93, %v136
    %v149 = vmul.f32 %v98, %v124
    %v150 = vmul.f32 %v98, %v128
    %v151 = vmul.f32 %v98, %v132
    %v152 = vmul.f32 %v98, %v136
    %153 = vset.pattern.permute.xlu0 1
    %154 = vperm.xlu0 %153, %v12
    %v155 = vpop.permute.xlu0 %154
    %157 = vset.pattern.permute.xlu0 1
    %158 = vperm.xlu0 %157, %v13
    %v159 = vpop.permute.xlu0 %158
    %161 = vset.pattern.permute.xlu0 1
    %162 = vperm.xlu0 %161, %v14
    %v163 = vpop.permute.xlu0 %162
    %165 = vset.pattern.permute.xlu0 1
    %166 = vperm.xlu0 %165, %v15
    %v167 = vpop.permute.xlu0 %166
    %v170 = vlaneseq
    %v171 = vshrl.u32 %v170, 7
    %v172 = vsub.s32 1, %v171
    %v173 = vrot.slane %v79, %v172
    %v174 = vlaneseq
    %v175 = vshrl.u32 %v174, 7
    %v176 = vsub.s32 3, %v175
    %v177 = vrot.slane %v79, %v176
    %v178 = vlaneseq
    %v179 = vshrl.u32 %v178, 7
    %v180 = vsub.s32 5, %v179
    %v181 = vrot.slane %v79, %v180
    %v182 = vlaneseq
    %v183 = vshrl.u32 %v182, 7
    %v184 = vsub.s32 7, %v183
    %v185 = vrot.slane %v79, %v184
    %v190 = vlaneseq
    %v191 = vshrl.u32 %v190, 7
    %v192 = vsub.s32 1, %v191
    %v193 = vrot.slane %v173, %v192
    %v194 = vlaneseq
    %v195 = vshrl.u32 %v194, 7
    %v196 = vsub.s32 1, %v195
    %v197 = vrot.slane %v177, %v196
    %v198 = vlaneseq
    %v199 = vshrl.u32 %v198, 7
    %v200 = vsub.s32 1, %v199
    %v201 = vrot.slane %v181, %v200
    %v202 = vlaneseq
    %v203 = vshrl.u32 %v202, 7
    %v204 = vsub.s32 1, %v203
    %v205 = vrot.slane %v185, %v204
    %v206 = vmul.f32 %v155, %v193
    %v207 = vmul.f32 %v155, %v197
    %v208 = vmul.f32 %v155, %v201
    %v209 = vmul.f32 %v155, %v205
    %v210 = vmul.f32 %v159, %v193
    %v211 = vmul.f32 %v159, %v197
    %v212 = vmul.f32 %v159, %v201
    %v213 = vmul.f32 %v159, %v205
    %v214 = vmul.f32 %v163, %v193
    %v215 = vmul.f32 %v163, %v197
    %v216 = vmul.f32 %v163, %v201
    %v217 = vmul.f32 %v163, %v205
    %v218 = vmul.f32 %v167, %v193
    %v219 = vmul.f32 %v167, %v197
    %v220 = vmul.f32 %v167, %v201
    %v221 = vmul.f32 %v167, %v205
    %v222 = vadd.f32 %v137, %v206
    %v223 = vadd.f32 %v138, %v207
    %v224 = vadd.f32 %v139, %v208
    %v225 = vadd.f32 %v140, %v209
    %v226 = vadd.f32 %v141, %v210
    %v227 = vadd.f32 %v142, %v211
    %v228 = vadd.f32 %v143, %v212
    %v229 = vadd.f32 %v144, %v213
    %v230 = vadd.f32 %v145, %v214
    %v231 = vadd.f32 %v146, %v215
    %v232 = vadd.f32 %v147, %v216
    %v233 = vadd.f32 %v148, %v217
    %v234 = vadd.f32 %v149, %v218
    %v235 = vadd.f32 %v150, %v219
    %v236 = vadd.f32 %v151, %v220
    %v237 = vadd.f32 %v152, %v221
    %238 = vset.pattern.permute.xlu0 2
    %239 = vperm.xlu0 %238, %v12
    %v240 = vpop.permute.xlu0 %239
    %242 = vset.pattern.permute.xlu0 2
    %243 = vperm.xlu0 %242, %v13
    %v244 = vpop.permute.xlu0 %243
    %246 = vset.pattern.permute.xlu0 2
    %247 = vperm.xlu0 %246, %v14
    %v248 = vpop.permute.xlu0 %247
    %250 = vset.pattern.permute.xlu0 2
    %251 = vperm.xlu0 %250, %v15
    %v252 = vpop.permute.xlu0 %251
    %v254 = vadd.f32 %v222, %v240
    %v255 = vadd.f32 %v223, %v240
    %v256 = vadd.f32 %v224, %v240
    %v257 = vadd.f32 %v225, %v240
    %v258 = vadd.f32 %v226, %v244
    %v259 = vadd.f32 %v227, %v244
    %v260 = vadd.f32 %v228, %v244
    %v261 = vadd.f32 %v229, %v244
    %v262 = vadd.f32 %v230, %v248
    %v263 = vadd.f32 %v231, %v248
    %v264 = vadd.f32 %v232, %v248
    %v265 = vadd.f32 %v233, %v248
    %v266 = vadd.f32 %v234, %v252
    %v267 = vadd.f32 %v235, %v252
    %v268 = vadd.f32 %v236, %v252
    %v269 = vadd.f32 %v237, %v252
    %v270 = vtanh.pop %v254
    %v271 = vtanh.pop %v255
    %v272 = vtanh.pop %v256
    %v273 = vtanh.pop %v257
    %v274 = vtanh.pop %v258
    %v275 = vtanh.pop %v259
    %v276 = vtanh.pop %v260
    %v277 = vtanh.pop %v261
    %v278 = vtanh.pop %v262
    %v279 = vtanh.pop %v263
    %v280 = vtanh.pop %v264
    %v281 = vtanh.pop %v265
    %v282 = vtanh.pop %v266
    %v283 = vtanh.pop %v267
    %v284 = vtanh.pop %v268
    %v285 = vtanh.pop %v269
    %286 = vset.pattern.permute.xlu0 3
    %287 = vperm.xlu0 %286, %v12
    %v288 = vpop.permute.xlu0 %287
    %290 = vset.pattern.permute.xlu0 3
    %291 = vperm.xlu0 %290, %v13
    %v292 = vpop.permute.xlu0 %291
    %294 = vset.pattern.permute.xlu0 3
    %295 = vperm.xlu0 %294, %v14
    %v296 = vpop.permute.xlu0 %295
    %298 = vset.pattern.permute.xlu0 3
    %299 = vperm.xlu0 %298, %v15
    %v300 = vpop.permute.xlu0 %299
    %v302 = vmul.f32 %v270, %v288
    %v303 = vmul.f32 %v271, %v288
    %v304 = vmul.f32 %v272, %v288
    %v305 = vmul.f32 %v273, %v288
    %v306 = vmul.f32 %v274, %v292
    %v307 = vmul.f32 %v275, %v292
    %v308 = vmul.f32 %v276, %v292
    %v309 = vmul.f32 %v277, %v292
    %v310 = vmul.f32 %v278, %v296
    %v311 = vmul.f32 %v279, %v296
    %v312 = vmul.f32 %v280, %v296
    %v313 = vmul.f32 %v281, %v296
    %v314 = vmul.f32 %v282, %v300
    %v315 = vmul.f32 %v283, %v300
    %v316 = vmul.f32 %v284, %v300
    %v317 = vmul.f32 %v285, %v300
    %v318 = vadd.f32 %v302, %v306
    %v319 = vadd.f32 %v318, %v310
    %v320 = vadd.f32 %v319, %v314
    %v321 = vrot.slane %v320, 4
    %v322 = vadd.f32 %v320, %v321
    %v323 = vrot.slane %v322, 2
    %v324 = vadd.f32 %v322, %v323
    %v325 = vrot.slane %v324, 1
    %v326 = vadd.f32 %v324, %v325
    %v327 = vadd.f32 %v303, %v307
    %v328 = vadd.f32 %v327, %v311
    %v329 = vadd.f32 %v328, %v315
    %v330 = vrot.slane %v329, 4
    %v331 = vadd.f32 %v329, %v330
    %v332 = vrot.slane %v331, 2
    %v333 = vadd.f32 %v331, %v332
    %v334 = vrot.slane %v333, 1
    %v335 = vadd.f32 %v333, %v334
    %v336 = vadd.f32 %v304, %v308
    %v337 = vadd.f32 %v336, %v312
    %v338 = vadd.f32 %v337, %v316
    %v339 = vrot.slane %v338, 4
    %v340 = vadd.f32 %v338, %v339
    %v341 = vrot.slane %v340, 2
    %v342 = vadd.f32 %v340, %v341
    %v343 = vrot.slane %v342, 1
    %v344 = vadd.f32 %v342, %v343
    %v345 = vadd.f32 %v305, %v309
    %v346 = vadd.f32 %v345, %v313
    %v347 = vadd.f32 %v346, %v317
    %v348 = vrot.slane %v347, 4
    %v349 = vadd.f32 %v347, %v348
    %v350 = vrot.slane %v349, 2
    %v351 = vadd.f32 %v349, %v350
    %v352 = vrot.slane %v351, 1
    %v353 = vadd.f32 %v351, %v352
    %354 = vset.pattern.permute.xlu0 4
    %355 = vperm.xlu0 %354, %v12
    %v356 = vpop.permute.xlu0 %355
    %v358 = vadd.f32 %v326, %v356
    %v359 = vadd.f32 %v335, %v356
    %v360 = vadd.f32 %v344, %v356
    %v361 = vadd.f32 %v353, %v356
    %v362 = vsub.f32 0.0, %v358
    %v363 = vsub.f32 0.0, %v359
    %v364 = vsub.f32 0.0, %v360
    %v365 = vsub.f32 0.0, %v361
    %v366 = vmul.f32 %v362, 1.442695
    %v367 = vpow.pop %v366
    %v368 = vmul.f32 %v363, 1.442695
    %v369 = vpow.pop %v368
    %v370 = vmul.f32 %v364, 1.442695
    %v371 = vpow.pop %v370
    %v372 = vmul.f32 %v365, 1.442695
    %v373 = vpow.pop %v372
    %v374 = vadd.f32 %v367, 1.0
    %v375 = vadd.f32 %v369, 1.0
    %v376 = vadd.f32 %v371, 1.0
    %v377 = vadd.f32 %v373, 1.0
    %v378 = vrcp.pop %v374
    %v379 = vmul.f32 1.0, %v378
    %v380 = vrcp.pop %v375
    %v381 = vmul.f32 1.0, %v380
    %v382 = vrcp.pop %v376
    %v383 = vmul.f32 1.0, %v382
    %v384 = vrcp.pop %v377
    %v385 = vmul.f32 1.0, %v384
    %v390 = vcombine.low %v379, %v381
    %v391 = vcombine.low %v383, %v385
    %v393 = vunpack.c.l.s4 1966171168
    %v394 = vunpack.c.0.s8 %v393
    %v395 = vlaneseq
    %v396 = vshrl.u32 %v395, 7
    %v397 = vsub.s32 %v394, %v396
    %v398 = vrot.slane %v390, %v397
    %v400 = vunpack.c.l.s4 1966171168
    %v401 = vunpack.c.0.s8 %v400
    %v402 = vlaneseq
    %v403 = vshrl.u32 %v402, 7
    %v404 = vsub.s32 %v401, %v403
    %v405 = vrot.slane %v391, %v404
    %v406 = vcombine.low %v398, %v405
    %v408 = vunpack.c.l.s4 1966171168
    %v409 = vunpack.c.0.s8 %v408
    %v410 = vlaneseq
    %v411 = vshrl.u32 %v410, 7
    %v412 = vsub.s32 %v409, %v411
    %v413 = vrot.slane %v406, %v412
    %v415 = vlaneseq
    %vm416 = vcmp.ge.s32.totalorder %v415, 0
    %vm417 = vcmp.lt.s32.totalorder %v415, 512
    %vm418 = vmand %vm416, %vm417
    %419 = vst.msk [vmem:[#allocation2] sm:$0xf] %vm418, %v413
    %v420 = vld [vmem:[%s0 + $0x8] sm:$0xff]
    %v421 = vmul.f32 %v420, %v420
    %v423 = vrot.slane %v421, 7
    %v424 = vrot.slane %v423, 2
    %v426 = vadd.f32 %v421, %v424
    %v427 = vrsqrt.pop %v426
    %v428 = vmul.f32 %v426, %v427
    %vm429 = vcmp.eq.f32.partialorder %v426, inf
    %v430 = vsel %vm429, %v426, %v428
    %vm431 = vcmp.eq.f32.partialorder %v426, 0.0
    %v432 = vand.u32 %v426, 2147483648
    %v433 = vsel %vm431, %v432, %v430
    %v435 = vrot.slane %v420, 7
    %v437 = vand.u32 2147483647, %v435
    %v438 = vand.u32 2147483647, %v420
    %v439 = vmin.f32 %v437, %v438
    %v440 = vmax.f32 %v437, %v438
    %v441 = vrcp.pop %v440
    %v442 = vmul.f32 %v439, %v441
    %v443 = vmul.f32 %v442, %v442
    %v444 = vmul.f32 0.002785687, %v443
    %v445 = vadd.f32 %v444, -0.015866
    %v446 = vmul.f32 %v445, %v443
    %v447 = vadd.f32 %v446, 0.04247222
    %v448 = vmul.f32 %v447, %v443
    %v449 = vadd.f32 %v448, -0.074975304
    %v450 = vmul.f32 %v449, %v443
    %v451 = vadd.f32 %v450, 0.1064488
    %v452 = vmul.f32 %v451, %v443
    %v453 = vadd.f32 %v452, -0.14207031
    %v454 = vmul.f32 %v453, %v443
    %v455 = vadd.f32 %v454, 0.19993454
    %v456 = vmul.f32 %v455, %v443
    %v457 = vadd.f32 %v456, -0.33333147
    %v458 = vmul.f32 %v457, %v443
    %v459 = vmul.f32 %v458, %v442
    %v460 = vadd.f32 %v459, %v442
    %vm461 = vcmp.gt.f32.partialorder %v438, %v437
    %v462 = vsub.f32 1.5707964, %v460
    %v463 = vsel %vm461, %v462, %v460
    %vm464 = vcmp.lt.f32.partialorder %v435, 0.0
    %v465 = vsub.f32 3.1415927, %v463
    %v466 = vsel %vm464, %v465, %v463
    %vm467 = vcmp.lt.s32.totalorder %v435, 0
    %v468 = vsel %vm467, 3.1415927, 0.0
    %vm469 = vcmp.eq.f32.partialorder %v420, 0.0
    %v470 = vsel %vm469, %v468, %v466
    %vm471 = vcmp.ne.f32.partialorder %v435, %v435
    %vm472 = vcmp.ne.f32.partialorder %v420, %v420
    %vm473 = vmor %vm471, %vm472
    %v474 = vsel %vm473, nan, %v470
    %vm475 = vcmp.lt.f32.partialorder %v435, 0.0
    %v476 = vsel %vm475, 2.3561945, 0.7853982
    %vm477 = vcmp.eq.s32.totalorder %v437, inf
    %vm478 = vcmp.eq.s32.totalorder %v438, inf
    %vm479 = vmand %vm477, %vm478
    %v480 = vsel %vm479, %v476, %v474
    %v481 = vand.u32 2147483647, %v480
    %v482 = vand.u32 %v420, 2147483648
    %v483 = vor.u32 %v481, %v482
    %v485 = vlaneseq
    %v486 = vshrl.u32 %v485, 7
    %v487 = vsub.s32 0, %v486
    %v488 = vrot.slane %v433, %v487
    %v489 = vlaneseq
    %v490 = vshrl.u32 %v489, 7
    %v491 = vsub.s32 2, %v490
    %v492 = vrot.slane %v433, %v491
    %v493 = vlaneseq
    %v494 = vshrl.u32 %v493, 7
    %v495 = vsub.s32 4, %v494
    %v496 = vrot.slane %v433, %v495
    %v497 = vlaneseq
    %v498 = vshrl.u32 %v497, 7
    %v499 = vsub.s32 6, %v498
    %v500 = vrot.slane %v433, %v499
    %v505 = vlaneseq
    %v506 = vshrl.u32 %v505, 7
    %v507 = vsub.s32 0, %v506
    %v508 = vrot.slane %v488, %v507
    %v509 = vlaneseq
    %v510 = vshrl.u32 %v509, 7
    %v511 = vsub.s32 0, %v510
    %v512 = vrot.slane %v492, %v511
    %v513 = vlaneseq
    %v514 = vshrl.u32 %v513, 7
    %v515 = vsub.s32 0, %v514
    %v516 = vrot.slane %v496, %v515
    %v517 = vlaneseq
    %v518 = vshrl.u32 %v517, 7
    %v519 = vsub.s32 0, %v518
    %v520 = vrot.slane %v500, %v519
    %v521 = vmul.f32 %v83, %v508
    %v522 = vmul.f32 %v83, %v512
    %v523 = vmul.f32 %v83, %v516
    %v524 = vmul.f32 %v83, %v520
    %v525 = vmul.f32 %v88, %v508
    %v526 = vmul.f32 %v88, %v512
    %v527 = vmul.f32 %v88, %v516
    %v528 = vmul.f32 %v88, %v520
    %v529 = vmul.f32 %v93, %v508
    %v530 = vmul.f32 %v93, %v512
    %v531 = vmul.f32 %v93, %v516
    %v532 = vmul.f32 %v93, %v520
    %v533 = vmul.f32 %v98, %v508
    %v534 = vmul.f32 %v98, %v512
    %v535 = vmul.f32 %v98, %v516
    %v536 = vmul.f32 %v98, %v520
    %v538 = vlaneseq
    %v539 = vshrl.u32 %v538, 7
    %v540 = vsub.s32 1, %v539
    %v541 = vrot.slane %v483, %v540
    %v542 = vlaneseq
    %v543 = vshrl.u32 %v542, 7
    %v544 = vsub.s32 3, %v543
    %v545 = vrot.slane %v483, %v544
    %v546 = vlaneseq
    %v547 = vshrl.u32 %v546, 7
    %v548 = vsub.s32 5, %v547
    %v549 = vrot.slane %v483, %v548
    %v550 = vlaneseq
    %v551 = vshrl.u32 %v550, 7
    %v552 = vsub.s32 7, %v551
    %v553 = vrot.slane %v483, %v552
    %v558 = vlaneseq
    %v559 = vshrl.u32 %v558, 7
    %v560 = vsub.s32 1, %v559
    %v561 = vrot.slane %v541, %v560
    %v562 = vlaneseq
    %v563 = vshrl.u32 %v562, 7
    %v564 = vsub.s32 1, %v563
    %v565 = vrot.slane %v545, %v564
    %v566 = vlaneseq
    %v567 = vshrl.u32 %v566, 7
    %v568 = vsub.s32 1, %v567
    %v569 = vrot.slane %v549, %v568
    %v570 = vlaneseq
    %v571 = vshrl.u32 %v570, 7
    %v572 = vsub.s32 1, %v571
    %v573 = vrot.slane %v553, %v572
    %v574 = vmul.f32 %v155, %v561
    %v575 = vmul.f32 %v155, %v565
    %v576 = vmul.f32 %v155, %v569
    %v577 = vmul.f32 %v155, %v573
    %v578 = vmul.f32 %v159, %v561
    %v579 = vmul.f32 %v159, %v565
    %v580 = vmul.f32 %v159, %v569
    %v581 = vmul.f32 %v159, %v573
    %v582 = vmul.f32 %v163, %v561
    %v583 = vmul.f32 %v163, %v565
    %v584 = vmul.f32 %v163, %v569
    %v585 = vmul.f32 %v163, %v573
    %v586 = vmul.f32 %v167, %v561
    %v587 = vmul.f32 %v167, %v565
    %v588 = vmul.f32 %v167, %v569
    %v589 = vmul.f32 %v167, %v573
    %v590 = vadd.f32 %v521, %v574
    %v591 = vadd.f32 %v522, %v575
    %v592 = vadd.f32 %v523, %v576
    %v593 = vadd.f32 %v524, %v577
    %v594 = vadd.f32 %v525, %v578
    %v595 = vadd.f32 %v526, %v579
    %v596 = vadd.f32 %v527, %v580
    %v597 = vadd.f32 %v528, %v581
    %v598 = vadd.f32 %v529, %v582
    %v599 = vadd.f32 %v530, %v583
    %v600 = vadd.f32 %v531, %v584
    %v601 = vadd.f32 %v532, %v585
    %v602 = vadd.f32 %v533, %v586
    %v603 = vadd.f32 %v534, %v587
    %v604 = vadd.f32 %v535, %v588
    %v605 = vadd.f32 %v536, %v589
    %v606 = vadd.f32 %v590, %v240
    %v607 = vadd.f32 %v591, %v240
    %v608 = vadd.f32 %v592, %v240
    %v609 = vadd.f32 %v593, %v240
    %v610 = vadd.f32 %v594, %v244
    %v611 = vadd.f32 %v595, %v244
    %v612 = vadd.f32 %v596, %v244
    %v613 = vadd.f32 %v597, %v244
    %v614 = vadd.f32 %v598, %v248
    %v615 = vadd.f32 %v599, %v248
    %v616 = vadd.f32 %v600, %v248
    %v617 = vadd.f32 %v601, %v248
    %v618 = vadd.f32 %v602, %v252
    %v619 = vadd.f32 %v603, %v252
    %v620 = vadd.f32 %v604, %v252
    %v621 = vadd.f32 %v605, %v252
    %v622 = vtanh.pop %v606
    %v623 = vtanh.pop %v607
    %v624 = vtanh.pop %v608
    %v625 = vtanh.pop %v609
    %v626 = vtanh.pop %v610
    %v627 = vtanh.pop %v611
    %v628 = vtanh.pop %v612
    %v629 = vtanh.pop %v613
    %v630 = vtanh.pop %v614
    %v631 = vtanh.pop %v615
    %v632 = vtanh.pop %v616
    %v633 = vtanh.pop %v617
    %v634 = vtanh.pop %v618
    %v635 = vtanh.pop %v619
    %v636 = vtanh.pop %v620
    %v637 = vtanh.pop %v621
    %v638 = vmul.f32 %v622, %v288
    %v639 = vmul.f32 %v623, %v288
    %v640 = vmul.f32 %v624, %v288
    %v641 = vmul.f32 %v625, %v288
    %v642 = vmul.f32 %v626, %v292
    %v643 = vmul.f32 %v627, %v292
    %v644 = vmul.f32 %v628, %v292
    %v645 = vmul.f32 %v629, %v292
    %v646 = vmul.f32 %v630, %v296
    %v647 = vmul.f32 %v631, %v296
    %v648 = vmul.f32 %v632, %v296
    %v649 = vmul.f32 %v633, %v296
    %v650 = vmul.f32 %v634, %v300
    %v651 = vmul.f32 %v635, %v300
    %v652 = vmul.f32 %v636, %v300
    %v653 = vmul.f32 %v637, %v300
    %v654 = vadd.f32 %v638, %v642
    %v655 = vadd.f32 %v654, %v646
    %v656 = vadd.f32 %v655, %v650
    %v657 = vrot.slane %v656, 4
    %v658 = vadd.f32 %v656, %v657
    %v659 = vrot.slane %v658, 2
    %v660 = vadd.f32 %v658, %v659
    %v661 = vrot.slane %v660, 1
    %v662 = vadd.f32 %v660, %v661
    %v663 = vadd.f32 %v639, %v643
    %v664 = vadd.f32 %v663, %v647
    %v665 = vadd.f32 %v664, %v651
    %v666 = vrot.slane %v665, 4
    %v667 = vadd.f32 %v665, %v666
    %v668 = vrot.slane %v667, 2
    %v669 = vadd.f32 %v667, %v668
    %v670 = vrot.slane %v669, 1
    %v671 = vadd.f32 %v669, %v670
    %v672 = vadd.f32 %v640, %v644
    %v673 = vadd.f32 %v672, %v648
    %v674 = vadd.f32 %v673, %v652
    %v675 = vrot.slane %v674, 4
    %v676 = vadd.f32 %v674, %v675
    %v677 = vrot.slane %v676, 2
    %v678 = vadd.f32 %v676, %v677
    %v679 = vrot.slane %v678, 1
    %v680 = vadd.f32 %v678, %v679
    %v681 = vadd.f32 %v641, %v645
    %v682 = vadd.f32 %v681, %v649
    %v683 = vadd.f32 %v682, %v653
    %v684 = vrot.slane %v683, 4
    %v685 = vadd.f32 %v683, %v684
    %v686 = vrot.slane %v685, 2
    %v687 = vadd.f32 %v685, %v686
    %v688 = vrot.slane %v687, 1
    %v689 = vadd.f32 %v687, %v688
    %v690 = vadd.f32 %v662, %v356
    %v691 = vadd.f32 %v671, %v356
    %v692 = vadd.f32 %v680, %v356
    %v693 = vadd.f32 %v689, %v356
    %v694 = vsub.f32 0.0, %v690
    %v695 = vsub.f32 0.0, %v691
    %v696 = vsub.f32 0.0, %v692
    %v697 = vsub.f32 0.0, %v693
    %v698 = vmul.f32 %v694, 1.442695
    %v699 = vpow.pop %v698
    %v700 = vmul.f32 %v695, 1.442695
    %v701 = vpow.pop %v700
    %v702 = vmul.f32 %v696, 1.442695
    %v703 = vpow.pop %v702
    %v704 = vmul.f32 %v697, 1.442695
    %v705 = vpow.pop %v704
    %v706 = vadd.f32 %v699, 1.0
    %v707 = vadd.f32 %v701, 1.0
    %v708 = vadd.f32 %v703, 1.0
    %v709 = vadd.f32 %v705, 1.0
    %v710 = vrcp.pop %v706
    %v711 = vmul.f32 1.0, %v710
    %v712 = vrcp.pop %v707
    %v713 = vmul.f32 1.0, %v712
    %v714 = vrcp.pop %v708
    %v715 = vmul.f32 1.0, %v714
    %v716 = vrcp.pop %v709
    %v717 = vmul.f32 1.0, %v716
    %v722 = vcombine.low %v711, %v713
    %v723 = vcombine.low %v715, %v717
    %v725 = vunpack.c.l.s4 1966171168
    %v726 = vunpack.c.0.s8 %v725
    %v727 = vlaneseq
    %v728 = vshrl.u32 %v727, 7
    %v729 = vsub.s32 %v726, %v728
    %v730 = vrot.slane %v722, %v729
    %v732 = vunpack.c.l.s4 1966171168
    %v733 = vunpack.c.0.s8 %v732
    %v734 = vlaneseq
    %v735 = vshrl.u32 %v734, 7
    %v736 = vsub.s32 %v733, %v735
    %v737 = vrot.slane %v723, %v736
    %v738 = vcombine.low %v730, %v737
    %v740 = vunpack.c.l.s4 1966171168
    %v741 = vunpack.c.0.s8 %v740
    %v742 = vlaneseq
    %v743 = vshrl.u32 %v742, 7
    %v744 = vsub.s32 %v741, %v743
    %v745 = vrot.slane %v738, %v744
    %747 = vst.msk [vmem:[#allocation2 + $0x4] sm:$0xf] %vm418, %v745
    // Predicated region
    $region10: #{polarnet_forward.1} parent=1 // pred_check
      _
    $region11: #{polarnet_forward.1} parent=1 // pred_check_branch
      %749 = sbr.rel (0) target = $region13
    $region12: #{polarnet_forward.1} parent=1 // pred_region
      %s751 = ssub.s32 128, 128
      %752 = vsyncadd [#allocation3], %s751
      %s754 = sshll.u32 [#allocation2], 4
      %s755 = int_to_ptr.vmem [resolvable:$true] %s754
      %757 = dma.vmem_to_hbm [thread:$0]  %s755, 128, %s2, [#allocation3]
    $region13: #{polarnet_forward.1} parent=1 // pred_fallthru
      _
    // Predicated region
    $region14: #{polarnet_forward.1} parent=1 // pred_check
      _
    $region15: #{polarnet_forward.1} parent=1 // pred_check_branch
      %759 = sbr.rel (0) target = $region17
    $region16: #{polarnet_forward.1} parent=1 // pred_region
      %760 = dma.done [#allocation3], 128
    $region17: #{polarnet_forward.1} parent=1 // pred_fallthru
      _
    %761 = vsyncpa [#allocation3], 1

</llo_original>
